<compile_context>
chip_gen: v6e
topology: v6e:2x2x1
jax: 0.10.0
libtpu: 0.0.40
codegen_flags: <defaults>
</compile_context>

<pallas_src>
import functools
import re

import jax
import jax.numpy as jnp
from jax.experimental import pallas as pl
from jax.experimental.pallas import tpu as pltpu

LANES = 128


def _round_up(a, m):
    return ((a + m - 1) // m) * m


def _round_down(a, m):
    return (a // m) * m


def _sublanes_for_dtype(dtype) -> int:
    """Minimum sublane multiple for the second-to-last block dim."""
    itemsize = jnp.dtype(dtype).itemsize
    if itemsize >= 4:
        return 8
    if itemsize == 2:
        return 16
    return 32


@functools.lru_cache(maxsize=1)
def _tpu_generation() -> int:
    """Best-effort TPU generation (5, 6, 7, ...); 0 if unknown."""
    try:
        info = pltpu.get_tpu_info()
        ver = getattr(info, "chip_version", None)
        name = getattr(ver, "name", "") or (str(ver) if ver is not None else "")
        m = re.search(r"(\d+)", name)
        if m:
            return int(m.group(1))
    except Exception:
        pass
    try:
        kind = jax.devices()[0].device_kind
        m = re.search(r"(\d+)", kind)
        if m:
            return int(m.group(1))
    except Exception:
        pass
    return 0


def _tpu_policy():
    gen = _tpu_generation()
    if gen >= 7:
        # v7x: 64 MiB VMEM, ~3.2 TB/s HBM, 2 TensorCores/chip.
        return {"max_block_bytes": 8 << 20, "vmem_limit": 48 << 20, "num_tcs": 2}
    if gen == 6:
        # v6e: 128 MiB VMEM, ~1.3-1.4 TB/s HBM, 1 TensorCore.
        return {"max_block_bytes": 6 << 20, "vmem_limit": 64 << 20, "num_tcs": 1}
    # v5e / older / unknown: conservative sizes (still > v5e's 16 MiB scoped default).
    return {"max_block_bytes": 3 << 20, "vmem_limit": 32 << 20, "num_tcs": 1}


def _exp_tonemap_kernel(neg_gain_ref, x_ref, o_ref):
    # clamp(1 - exp(-gain*x), 0, 1) == max(1 - exp(x * (-gain)), 0)  since exp >= 0.
    # TODO(synk): bf16-native math on v6e/v7x (skip the f32 upcast) for 2-byte inputs.
    ng = neg_gain_ref[0]                       # -gain, f32 scalar from SMEM
    x = x_ref[...].astype(jnp.float32)
    res = 1.0 - jnp.exp(x * ng)
    o_ref[...] = jnp.maximum(res, 0.0).astype(o_ref.dtype)


def _choose_tile(rows, sublanes, itemsize, tile_cap, num_tcs):
    if rows <= sublanes:
        # Block equals the full (possibly ragged) sublane extent -- always legal.
        return rows
    rows_floor = _round_down(rows, sublanes)
    tile = max(sublanes, min(tile_cap, rows_floor))
    if num_tcs >= 2:
        target_steps = 2 * num_tcs            # >=2 pipelined steps per TensorCore
        if rows * LANES * itemsize >= target_steps * (512 * 1024):
            tile = min(tile, _round_up(pl.cdiv(rows, target_steps), sublanes))
        steps = pl.cdiv(rows, tile)
        if steps > 1 and steps % 2 == 1:      # prefer an even step count across 2 TCs
            want = _round_up(pl.cdiv(rows, steps + 1), sublanes)
            if sublanes <= want < tile:
                tile = want
        tile = max(sublanes, min(tile, rows_floor))
    return tile


def _run_slab(slab, neg_gain, policy, tile_rows):
    rows, _ = slab.shape
    dtype = slab.dtype
    itemsize = jnp.dtype(dtype).itemsize
    sublanes = _sublanes_for_dtype(dtype)

    tile_cap = max(sublanes,
                   _round_down(policy["max_block_bytes"] // (LANES * itemsize), sublanes))
    if tile_rows is not None:
        tile_cap = max(sublanes,
                       min(tile_cap, _round_down(int(tile_rows), sublanes) or sublanes))
    tile = _choose_tile(rows, sublanes, itemsize, tile_cap, policy["num_tcs"])
    grid = (pl.cdiv(rows, tile),)

    return pl.pallas_call(
        _exp_tonemap_kernel,
        out_shape=jax.ShapeDtypeStruct((rows, LANES), dtype),
        grid_spec=pltpu.PrefetchScalarGridSpec(
            num_scalar_prefetch=0,
            grid=grid,
            in_specs=[
                pl.BlockSpec(memory_space=pltpu.MemorySpace.SMEM),   # -gain scalar
                pl.BlockSpec((tile, LANES), lambda i: (i, 0)),       # x slab
            ],
            out_specs=pl.BlockSpec((tile, LANES), lambda i: (i, 0)),
        ),
        compiler_params=pltpu.CompilerParams(
            dimension_semantics=("parallel",),
            vmem_limit_bytes=policy["vmem_limit"],
        ),
    )(neg_gain, slab)


def exp_tonemap(x: jax.Array, gain: float = 1.0, *, tile_rows=None) -> jax.Array:
    """clamp(1 - exp(-gain * x), 0, 1), elementwise, any shape."""
    orig_shape = x.shape
    orig_dtype = x.dtype
    n = x.size
    if n == 0:
        return x

    policy = _tpu_policy()
    neg_gain = jnp.asarray([-float(gain)], dtype=jnp.float32)

    flat = x.reshape(-1)
    n_tail = n % LANES
    n_main = n - n_tail

    out_main = None
    if n_main:
        slab = (flat if n_tail == 0 else flat[:n_main]).reshape(n_main // LANES, LANES)
        out_main = _run_slab(slab, neg_gain, policy, tile_rows)
        if n_tail == 0:
            return out_main.reshape(orig_shape)     # common aligned case: zero-copy path
        out_main = out_main.reshape(-1)

    # <128-element ragged tail: tiny elementwise jnp op (same math as the kernel).
    # TODO(synk): fold the tail into the kernel (pl.ANY input + manual masked DMA) to also
    # remove the residual prefix slice + concatenate copies on unaligned inputs.
    tail = flat[n_main:].astype(jnp.float32)
    tail_out = jnp.maximum(1.0 - jnp.exp(tail * (-float(gain))), 0.0).astype(orig_dtype)
    if out_main is None:
        return tail_out.reshape(orig_shape)
    return jnp.concatenate([out_main, tail_out]).reshape(orig_shape)


def exp_tonemap_ref(x: jax.Array, gain: float = 1.0) -> jax.Array:
    """Pure-JAX reference mirroring PyTorch Exp.forward."""
    x = x * gain
    res = 1.0 - jnp.exp(-x)
    return jnp.clip(res, 0.0, 1.0)


if __name__ == "__main__":
    key = jax.random.PRNGKey(0)

    # Primary check: NCHW input, 128-aligned element count (pure kernel path).
    x = jax.random.uniform(key, (2, 4, 16, 16), dtype=jnp.float32, minval=-2.0, maxval=4.0)
    y = jax.block_until_ready(exp_tonemap(x, gain=1.0))
    y_ref = exp_tonemap_ref(x, gain=1.0)
    assert y.shape == x.shape and y.dtype == x.dtype
    assert jnp.allclose(y, y_ref, atol=1e-6, rtol=1e-6), "mismatch vs reference (aligned)"

    # Secondary check: non-128-aligned shape + non-default gain
    # (aligned prefix through the kernel, <128-element tail via jnp).
    x2 = jax.random.uniform(jax.random.PRNGKey(1), (3, 5, 7, 11),
                            dtype=jnp.float32, minval=-2.0, maxval=4.0)
    y2 = jax.block_until_ready(exp_tonemap(x2, gain=0.7))
    y2_ref = exp_tonemap_ref(x2, gain=0.7)
    assert y2.shape == x2.shape and y2.dtype == x2.dtype
    assert jnp.allclose(y2, y2_ref, atol=1e-6, rtol=1e-6), "mismatch vs reference (ragged)"

    print("KERNEL_OK")
</pallas_src>

<mosaic_0001>
module attributes {stable_mosaic.version = 11 : i64} {
  func.func @_exp_tonemap_kernel(%arg0: i32, %arg1: memref<1xf32, #tpu.memory_space<smem>>, %arg2: memref<16x128xf32, #tpu.memory_space<vmem>>, %arg3: memref<16x128xf32, #tpu.memory_space<vmem>>) attributes {dimension_semantics = [#tpu.dimension_semantics<parallel>], iteration_bounds = array<i64: 1>, scalar_prefetch = 0 : i64, scratch_operands = 0 : i64, tpu.core_type = #tpu.core_type<tc>, window_params = [{transform_indices = @transform_0, window_bounds = array<i64: 1>}, {transform_indices = @transform_1, window_bounds = array<i64: 16, 128>}, {transform_indices = @transform_2, window_bounds = array<i64: 16, 128>}]} {
    %c0 = arith.constant 0 : index
    %0 = memref.load %arg1[%c0] : memref<1xf32, #tpu.memory_space<smem>>
    %c0_0 = arith.constant 0 : index
    %c0_1 = arith.constant 0 : index
    %1 = vector.load %arg2[%c0_0, %c0_1] : memref<16x128xf32, #tpu.memory_space<vmem>>, vector<16x128xf32>
    %2 = vector.broadcast %0 : f32 to vector<16x128xf32>
    %3 = arith.mulf %1, %2 : vector<16x128xf32>
    %4 = math.exp %3 : vector<16x128xf32>
    %cst = arith.constant 1.000000e+00 : f32
    %5 = vector.broadcast %cst : f32 to vector<16x128xf32>
    %6 = arith.subf %5, %4 : vector<16x128xf32>
    %cst_2 = arith.constant 0.000000e+00 : f32
    %7 = vector.broadcast %cst_2 : f32 to vector<16x128xf32>
    %8 = arith.maximumf %6, %7 : vector<16x128xf32>
    %c0_3 = arith.constant 0 : index
    %c0_4 = arith.constant 0 : index
    %9 = vector.load %arg3[%c0_3, %c0_4] : memref<16x128xf32, #tpu.memory_space<vmem>>, vector<16x128xf32>
    tpu.vector_store %arg3[%c0_3, %c0_4], %8 {strides = array<i32>} : memref<16x128xf32, #tpu.memory_space<vmem>>, vector<16x128xf32>,
    return
  }
  func.func @transform_0(%arg0: i32) -> i32 {
    %c0_i32 = arith.constant 0 : i32
    %c0_i32_0 = arith.constant 0 : i32
    return %c0_i32 : i32
  }
  func.func @transform_1(%arg0: i32) -> (i32, i32) {
    %c0_i32 = arith.constant 0 : i32
    %c0_i32_0 = arith.constant 0 : i32
    return %arg0, %c0_i32 : i32, i32
  }
  func.func @transform_2(%arg0: i32) -> (i32, i32) {
    %c0_i32 = arith.constant 0 : i32
    %c0_i32_0 = arith.constant 0 : i32
    return %arg0, %c0_i32 : i32, i32
  }
}

</mosaic_0001>

<llo_original>
// kernel: tpu_custom_call.1
$region0: #{tpu_custom_call.1}
  #allocation0 [shape = 'u32[]', space=smem, size = 0x4, offset = 0x4, fixed_abs, tag = 'smem constant byte address 0x4 - core index']
  #allocation1 [shape = 'u32[144,128]{1,0:T(1,128)}', space=vmem, size = 0x12000, scoped, tag = 'internal scratch']
  #allocation2 [shape = 'f32[1]{0:T(128)S(6)}', space=smem, size = 0x200, scoped, tag = 'scoped memory for tpu_custom_call.1']
  %s0 = inlined_call_operand.<no memory space> [shape: f32[1], index: 0, kind: input, shape index: {}]
  %s1 = inlined_call_operand.hbm [shape: f32[16,128], index: 1, kind: input, shape index: {}]
  %s2 = inlined_call_operand.hbm [shape: f32[16,128], index: 2, kind: output, shape index: {}]
  %s3 = sld [smem:[#allocation0]]
  $region22: #{tpu_custom_call.1} parent=0
    _
  %s5 = ssub.s32 1, %s3
  %s6 = scalar_select 0, %s5, %s3
  %7 = sst [smem:[#allocation2]] %s0
  $region1: #{tpu_custom_call.1} parent=0
    #allocation3 [shape = 'u8[8192]{0}', space=vmem, size = 0x2000, scoped, tag = 'input window, operand 1, single buffered']
    #allocation4 [shape = 's32[1]{0}', space=sflag, size = 0x4, scoped, tag = 'scoped memory for tpu_custom_call.1']
    #allocation5 [shape = 's32[1]{0}', space=sflag, size = 0x4, scoped, tag = 'scoped memory for tpu_custom_call.1']
    #allocation6 [shape = 'u8[8192]{0}', space=vmem, size = 0x2000, scoped, tag = 'output window, operand 0, single buffered']
    %8 = vsyncpa [#allocation4], 0
    %9 = vsyncpa [#allocation5], 0
    // Predicated region
    $region2: #{tpu_custom_call.1} parent=1 // pred_check
      _
    $region3: #{tpu_custom_call.1} parent=1 // pred_check_branch
      %11 = sbr.rel (0) target = $region5
    $region4: #{tpu_custom_call.1} parent=1 // pred_region
      _
    $region5: #{tpu_custom_call.1} parent=1 // pred_fallthru
      _
    // Predicated region
    $region6: #{tpu_custom_call.1} parent=1 // pred_check
      _
    $region7: #{tpu_custom_call.1} parent=1 // pred_check_branch
      %13 = sbr.rel (0) target = $region9
    $region8: #{tpu_custom_call.1} parent=1 // pred_region
      %s15 = ssub.s32 256, 256
      %16 = vsyncadd [#allocation4], %s15
      %s17 = sshll.u32 [#allocation3], 4
      %s18 = int_to_ptr.vmem [resolvable:$true] %s17
      %23 = dma.hbm_to_vmem [thread:$0]  %s1, 256, %s18, [#allocation4], 128, 128, 8
    $region9: #{tpu_custom_call.1} parent=1 // pred_fallthru
      _
    // Predicated region
    $region10: #{tpu_custom_call.1} parent=1 // pred_check
      _
    $region11: #{tpu_custom_call.1} parent=1 // pred_check_branch
      %25 = sbr.rel (0) target = $region13
    $region12: #{tpu_custom_call.1} parent=1 // pred_region
      %26 = dma.done [#allocation4], 256
    $region13: #{tpu_custom_call.1} parent=1 // pred_fallthru
      _
    %s27 = sld [smem:[#allocation2]]
    %v28 = vld [vmem:[#allocation3] sm:$0xff]
    %v29 = vld [vmem:[#allocation3 + $0x8] sm:$0xff]
    %v30 = vstv %s27
    %v31 = vmul.f32 %v28, %v30
    %v32 = vmul.f32 %v29, %v30
    %v33 = vmul.f32 %v31, 1.442695
    %v34 = vpow.pop %v33
    %v35 = vmul.f32 %v32, 1.442695
    %v36 = vpow.pop %v35
    %v37 = vsub.f32 1.0, %v34
    %v38 = vsub.f32 1.0, %v36
    %v39 = vmax.f32 %v37, 0.0
    %v40 = vmax.f32 %v38, 0.0
    %41 = vst [vmem:[#allocation6] sm:$0xff] %v39
    %42 = vst [vmem:[#allocation6 + $0x8] sm:$0xff] %v40
    // Predicated region
    $region14: #{tpu_custom_call.1} parent=1 // pred_check
      _
    $region15: #{tpu_custom_call.1} parent=1 // pred_check_branch
      %44 = sbr.rel (0) target = $region17
    $region16: #{tpu_custom_call.1} parent=1 // pred_region
      %s46 = ssub.s32 256, 256
      %47 = vsyncadd [#allocation5], %s46
      %s48 = sshll.u32 [#allocation6], 4
      %s49 = int_to_ptr.vmem [resolvable:$true] %s48
      %54 = dma.vmem_to_hbm [thread:$0]  %s49, 256, %s2, [#allocation5], 128, 128, 8
    $region17: #{tpu_custom_call.1} parent=1 // pred_fallthru
      _
    // Predicated region
    $region18: #{tpu_custom_call.1} parent=1 // pred_check
      _
    $region19: #{tpu_custom_call.1} parent=1 // pred_check_branch
      %56 = sbr.rel (0) target = $region21
    $region20: #{tpu_custom_call.1} parent=1 // pred_region
      %57 = dma.done [#allocation5], 256
    $region21: #{tpu_custom_call.1} parent=1 // pred_fallthru
      _
    %58 = vsyncpa [#allocation4], 1
    %59 = vsyncpa [#allocation5], 1

</llo_original>
